<compile_context>
chip_gen: v5e
topology: v5e:2x2
jax: 0.10.0
libtpu: 0.0.40
codegen_flags: <defaults>
</compile_context>

<pallas_src>
import functools

import jax
import jax.numpy as jnp
from jax.experimental import pallas as pl
from jax.experimental.pallas import tpu as pltpu

EPS = 1e-5
SLOPE = 0.01                     # nn.LeakyReLU default negative_slope
LANE = 128                       # TPU lane width (last-dim alignment)
SUBLANE = 8                      # TPU sublane width
MAX_TM = 512                     # row-tile size (sweepable)
VMEM_LIMIT = 32 * 1024 * 1024    # safe on v5e/v6e (128 MiB) and v7x (64 MiB)


def _round_up(x, m):
    return (x + m - 1) // m * m


def _pad2d(a, rows, cols):
    r, c = a.shape
    return jnp.pad(a, ((0, rows - r), (0, cols - c)))


# ------------------------------ Pallas kernels ------------------------------

def _matmul_stats_kernel(p_ref, w_ref, y_ref, stats_ref, *, mxu_dtype):
    """Pass 1: y = patches @ W (MXU, f32 acc) + per-channel sum / sumsq."""
    @pl.when(pl.program_id(0) == 0)
    def _():
        stats_ref[...] = jnp.zeros_like(stats_ref)

    p = p_ref[...]
    w = w_ref[...]
    if mxu_dtype != jnp.float32:
        p = p.astype(mxu_dtype)
        w = w.astype(mxu_dtype)
    y = jnp.dot(p, w, preferred_element_type=jnp.float32)
    y_ref[...] = y
    s = jnp.sum(y, axis=0, keepdims=True)
    ss = jnp.sum(y * y, axis=0, keepdims=True)
    stats_ref[...] = stats_ref[...] + jnp.concatenate([s, ss], axis=0)


def _bn_act_kernel(y_ref, stats_ref, g_ref, b_ref, o_ref, *, m_true, act):
    """Pass 2: BN (batch stats) + optional LeakyReLU."""
    inv_m = 1.0 / m_true
    mean = stats_ref[0:1, :] * inv_m
    var = stats_ref[1:2, :] * inv_m - mean * mean
    scale = jax.lax.rsqrt(var + EPS) * g_ref[...]
    y = (y_ref[...] - mean) * scale + b_ref[...]
    if act:
        y = jnp.where(y > 0, y, SLOPE * y)
    o_ref[...] = y


def _bn_add_act_kernel(y_ref, stats_ref, g_ref, b_ref, r_ref, o_ref, *, m_true):
    """Pass 2: BN + raw (identity) residual + LeakyReLU."""
    inv_m = 1.0 / m_true
    mean = stats_ref[0:1, :] * inv_m
    var = stats_ref[1:2, :] * inv_m - mean * mean
    scale = jax.lax.rsqrt(var + EPS) * g_ref[...]
    y = (y_ref[...] - mean) * scale + b_ref[...] + r_ref[...]
    o_ref[...] = jnp.where(y > 0, y, SLOPE * y)


def _bn_bn_add_act_kernel(y_ref, ys_ref, st_ref, sts_ref,
                          g_ref, b_ref, gs_ref, bs_ref, o_ref, *, m_true):
    """Pass 2: BN(main) + BN(projection shortcut) + add + LeakyReLU."""
    inv_m = 1.0 / m_true
    mean = st_ref[0:1, :] * inv_m
    var = st_ref[1:2, :] * inv_m - mean * mean
    y = (y_ref[...] - mean) * (jax.lax.rsqrt(var + EPS) * g_ref[...]) + b_ref[...]
    mean_s = sts_ref[0:1, :] * inv_m
    var_s = sts_ref[1:2, :] * inv_m - mean_s * mean_s
    s = (ys_ref[...] - mean_s) * (jax.lax.rsqrt(var_s + EPS) * gs_ref[...]) + bs_ref[...]
    y = y + s
    o_ref[...] = jnp.where(y > 0, y, SLOPE * y)


# ------------------------------ pallas_call wrappers ------------------------

def _row_spec(tm, cols):
    return pl.BlockSpec((tm, cols), lambda i: (i, 0))


def _full_spec(rows, cols):
    return pl.BlockSpec((rows, cols), lambda i: (0, 0))


def matmul_stats(patches, w, *, tm, mxu_dtype=jnp.float32):
    mp, kp = patches.shape
    cp = w.shape[1]
    return pl.pallas_call(
        functools.partial(_matmul_stats_kernel, mxu_dtype=mxu_dtype),
        grid=(mp // tm,),
        in_specs=[_row_spec(tm, kp), _full_spec(kp, cp)],
        out_specs=(_row_spec(tm, cp), _full_spec(2, cp)),
        out_shape=(jax.ShapeDtypeStruct((mp, cp), jnp.float32),
                   jax.ShapeDtypeStruct((2, cp), jnp.float32)),
        compiler_params=pltpu.CompilerParams(
            dimension_semantics=("arbitrary",),   # stats accumulator revisited
            vmem_limit_bytes=VMEM_LIMIT),
    )(patches, w)


def bn_act(y, stats, gamma, beta, *, m_true, tm, act=True):
    mp, cp = y.shape
    return pl.pallas_call(
        functools.partial(_bn_act_kernel, m_true=float(m_true), act=act),
        grid=(mp // tm,),
        in_specs=[_row_spec(tm, cp), _full_spec(2, cp),
                  _full_spec(1, cp), _full_spec(1, cp)],
        out_specs=_row_spec(tm, cp),
        out_shape=jax.ShapeDtypeStruct((mp, cp), jnp.float32),
        compiler_params=pltpu.CompilerParams(
            dimension_semantics=("parallel",),
            vmem_limit_bytes=VMEM_LIMIT),
    )(y, stats, gamma, beta)


def bn_add_act(y, stats, gamma, beta, res, *, m_true, tm):
    mp, cp = y.shape
    return pl.pallas_call(
        functools.partial(_bn_add_act_kernel, m_true=float(m_true)),
        grid=(mp // tm,),
        in_specs=[_row_spec(tm, cp), _full_spec(2, cp),
                  _full_spec(1, cp), _full_spec(1, cp), _row_spec(tm, cp)],
        out_specs=_row_spec(tm, cp),
        out_shape=jax.ShapeDtypeStruct((mp, cp), jnp.float32),
        compiler_params=pltpu.CompilerParams(
            dimension_semantics=("parallel",),
            vmem_limit_bytes=VMEM_LIMIT),
    )(y, stats, gamma, beta, res)


def bn_bn_add_act(y, stats, gamma, beta, ys, stats_s, gamma_s, beta_s,
                  *, m_true, tm):
    mp, cp = y.shape
    return pl.pallas_call(
        functools.partial(_bn_bn_add_act_kernel, m_true=float(m_true)),
        grid=(mp // tm,),
        in_specs=[_row_spec(tm, cp), _row_spec(tm, cp),
                  _full_spec(2, cp), _full_spec(2, cp),
                  _full_spec(1, cp), _full_spec(1, cp),
                  _full_spec(1, cp), _full_spec(1, cp)],
        out_specs=_row_spec(tm, cp),
        out_shape=jax.ShapeDtypeStruct((mp, cp), jnp.float32),
        compiler_params=pltpu.CompilerParams(
            dimension_semantics=("parallel",),
            vmem_limit_bytes=VMEM_LIMIT),
    )(y, ys, stats, stats_s, gamma, beta, gamma_s, beta_s)


# ------------------------------ JAX glue -------------------------------------

def im2col(x_nhwc, ksize, stride, padding):
    """Extract conv patches.  Returns ((M, k*k*C), (N, Hout, Wout))."""
    n, h, w, c = x_nhwc.shape
    hout = (h + 2 * padding - ksize) // stride + 1
    wout = (w + 2 * padding - ksize) // stride + 1
    xp = jnp.pad(x_nhwc, ((0, 0), (padding, padding), (padding, padding), (0, 0)))
    cols = []
    for di in range(ksize):
        for dj in range(ksize):
            cols.append(
                xp[:, di:di + stride * hout:stride, dj:dj + stride * wout:stride, :])
    p = jnp.stack(cols, axis=3)  # (N, Hout, Wout, k*k, C)
    return p.reshape(n * hout * wout, ksize * ksize * c), (n, hout, wout)


def basic_block_forward(x_nchw, params, stride, cin, cout, *, mxu_dtype=jnp.float32):
    """Forward of the PyTorch BasicBlock.  x: NCHW float32, output NCHW."""
    x = jnp.transpose(x_nchw, (0, 2, 3, 1)).astype(jnp.float32)  # -> NHWC
    cp = _round_up(cout, LANE)

    # ---- conv1: 3x3 / stride / pad 1 -> BN -> LeakyReLU ----
    p1, (n, h1, w1) = im2col(x, 3, stride, 1)
    m1 = p1.shape[0]
    tm = min(MAX_TM, _round_up(m1, SUBLANE))
    mp = _round_up(m1, tm)

    k1p = _round_up(p1.shape[1], SUBLANE)
    p1p = _pad2d(p1, mp, k1p)
    w1p = _pad2d(params["w1"].reshape(-1, cout), k1p, cp)
    g1 = _pad2d(params["g1"], 1, cp)
    b1 = _pad2d(params["b1"], 1, cp)
    y1_raw, st1 = matmul_stats(p1p, w1p, tm=tm, mxu_dtype=mxu_dtype)
    y1 = bn_act(y1_raw, st1, g1, b1, m_true=m1, tm=tm, act=True)
    y1 = y1[:m1, :cout].reshape(n, h1, w1, cout)

    # ---- conv2: 3x3 / 1 / pad 1 (BN deferred to the fused epilogue) ----
    p2, _ = im2col(y1, 3, 1, 1)
    k2p = _round_up(p2.shape[1], SUBLANE)
    p2p = _pad2d(p2, mp, k2p)
    w2p = _pad2d(params["w2"].reshape(-1, cout), k2p, cp)
    g2 = _pad2d(params["g2"], 1, cp)
    b2 = _pad2d(params["b2"], 1, cp)
    y2_raw, st2 = matmul_stats(p2p, w2p, tm=tm, mxu_dtype=mxu_dtype)

    # ---- shortcut + fused BN(+BN) + residual add + LeakyReLU ----
    if stride != 1 or cin != cout:
        ps = x[:, ::stride, ::stride, :].reshape(m1, cin)
        ksp = _round_up(cin, SUBLANE)
        psp = _pad2d(ps, mp, ksp)
        wsp = _pad2d(params["ws"].reshape(cin, cout), ksp, cp)
        gs = _pad2d(params["gs"], 1, cp)
        bs = _pad2d(params["bs"], 1, cp)
        ys_raw, sts = matmul_stats(psp, wsp, tm=tm, mxu_dtype=mxu_dtype)
        out = bn_bn_add_act(y2_raw, st2, g2, b2, ys_raw, sts, gs, bs,
                            m_true=m1, tm=tm)
    else:
        res = _pad2d(x.reshape(m1, cin), mp, cp)
        out = bn_add_act(y2_raw, st2, g2, b2, res, m_true=m1, tm=tm)

    out = out[:m1, :cout].reshape(n, h1, w1, cout)
    return jnp.transpose(out, (0, 3, 1, 2))  # -> NCHW


# --------------------------- pure-JAX reference ------------------------------

def _ref_conv(x, w_hwio, stride, padding):
    return jax.lax.conv_general_dilated(
        x, w_hwio, window_strides=(stride, stride),
        padding=[(padding, padding), (padding, padding)],
        dimension_numbers=("NCHW", "HWIO", "NCHW"))


def _ref_bn(y, g, b):
    mean = jnp.mean(y, axis=(0, 2, 3), keepdims=True)
    var = jnp.mean(jnp.square(y - mean), axis=(0, 2, 3), keepdims=True)
    gc = g.reshape(1, -1, 1, 1)
    bc = b.reshape(1, -1, 1, 1)
    return (y - mean) * jax.lax.rsqrt(var + EPS) * gc + bc


def _leaky(y):
    return jnp.where(y > 0, y, SLOPE * y)


def reference(x, params, stride, cin, cout):
    y = _leaky(_ref_bn(_ref_conv(x, params["w1"], stride, 1),
                       params["g1"], params["b1"]))
    y = _ref_bn(_ref_conv(y, params["w2"], 1, 1), params["g2"], params["b2"])
    if stride != 1 or cin != cout:
        s = _ref_bn(_ref_conv(x, params["ws"], stride, 0),
                    params["gs"], params["bs"])
    else:
        s = x
    return _leaky(y + s)


# --------------------------------- main ---------------------------------------

if __name__ == "__main__":
    def make_params(key, cin, cout, stride):
        k1, k2, ks = jax.random.split(key, 3)
        p = dict(
            # conv weights stored HWIO (kh, kw, Cin, Cout)
            w1=0.1 * jax.random.normal(k1, (3, 3, cin, cout), jnp.float32),
            g1=jnp.ones((1, cout), jnp.float32),
            b1=jnp.zeros((1, cout), jnp.float32),
            w2=0.1 * jax.random.normal(k2, (3, 3, cout, cout), jnp.float32),
            g2=jnp.ones((1, cout), jnp.float32),
            b2=jnp.zeros((1, cout), jnp.float32),
        )
        if stride != 1 or cin != cout:
            p.update(
                ws=0.1 * jax.random.normal(ks, (1, 1, cin, cout), jnp.float32),
                gs=jnp.ones((1, cout), jnp.float32),
                bs=jnp.zeros((1, cout), jnp.float32),
            )
        return p

    key = jax.random.PRNGKey(0)
    kx1, kp1, kx2, kp2 = jax.random.split(key, 4)

    # Case 1: downsampling block (projection shortcut path).
    N, Cin, H, W, Cout, stride = 2, 4, 16, 16, 8, 2
    x = jax.random.normal(kx1, (N, Cin, H, W), jnp.float32)
    params = make_params(kp1, Cin, Cout, stride)
    out = jax.block_until_ready(basic_block_forward(x, params, stride, Cin, Cout))
    assert out.shape == (N, Cout, H // stride, W // stride)
    ref = reference(x, params, stride, Cin, Cout)
    assert jnp.allclose(out, ref, atol=1e-4, rtol=1e-4), \
        float(jnp.max(jnp.abs(out - ref)))

    # Case 2: identity-shortcut block.
    N, Cin, H, W, Cout, stride = 2, 8, 16, 16, 8, 1
    x = jax.random.normal(kx2, (N, Cin, H, W), jnp.float32)
    params = make_params(kp2, Cin, Cout, stride)
    out = jax.block_until_ready(basic_block_forward(x, params, stride, Cin, Cout))
    assert out.shape == (N, Cout, H, W)
    ref = reference(x, params, stride, Cin, Cout)
    assert jnp.allclose(out, ref, atol=1e-4, rtol=1e-4), \
        float(jnp.max(jnp.abs(out - ref)))

    print("KERNEL_OK")
</pallas_src>

<mosaic_0001>
module attributes {stable_mosaic.version = 11 : i64} {
  func.func @_matmul_stats_kernel(%arg0: i32, %arg1: memref<128x40xf32, #tpu.memory_space<vmem>>, %arg2: memref<40x128xf32, #tpu.memory_space<vmem>>, %arg3: memref<128x128xf32, #tpu.memory_space<vmem>>, %arg4: memref<2x128xf32, #tpu.memory_space<vmem>>) attributes {dimension_semantics = [#tpu.dimension_semantics<arbitrary>], iteration_bounds = array<i64: 1>, scalar_prefetch = 0 : i64, scratch_operands = 0 : i64, tpu.core_type = #tpu.core_type<tc>, window_params = [{transform_indices = @transform_0, window_bounds = array<i64: 128, 40>}, {pipeline_mode = #tpu.pipeline_mode<synchronous>, transform_indices = @transform_1, window_bounds = array<i64: 40, 128>}, {transform_indices = @transform_2, window_bounds = array<i64: 128, 128>}, {pipeline_mode = #tpu.pipeline_mode<synchronous>, transform_indices = @transform_3, window_bounds = array<i64: 2, 128>}]} {
    %c0_i32 = arith.constant 0 : i32
    %0 = arith.cmpi eq, %arg0, %c0_i32 : i32
    %1 = arith.extui %0 : i1 to i32
    %c0_i32_0 = arith.constant 0 : i32
    %2 = arith.cmpi ne, %1, %c0_i32_0 : i32
    scf.if %2 {
      %cst_12 = arith.constant 0.000000e+00 : f32
      %16 = vector.broadcast %cst_12 : f32 to vector<2x128xf32>
      %c0_13 = arith.constant 0 : index
      %c0_14 = arith.constant 0 : index
      %17 = vector.load %arg4[%c0_13, %c0_14] : memref<2x128xf32, #tpu.memory_space<vmem>>, vector<2x128xf32>
      tpu.vector_store %arg4[%c0_13, %c0_14], %16 {strides = array<i32>} : memref<2x128xf32, #tpu.memory_space<vmem>>, vector<2x128xf32>,
    } else {
    }
    %c0 = arith.constant 0 : index
    %c0_1 = arith.constant 0 : index
    %3 = vector.load %arg1[%c0, %c0_1] : memref<128x40xf32, #tpu.memory_space<vmem>>, vector<128x40xf32>
    %c0_2 = arith.constant 0 : index
    %c0_3 = arith.constant 0 : index
    %4 = vector.load %arg2[%c0_2, %c0_3] : memref<40x128xf32, #tpu.memory_space<vmem>>, vector<40x128xf32>
    %cst = arith.constant dense<0.000000e+00> : vector<128x128xf32>
    %5 = tpu.matmul %3, %4, %cst {dimension_numbers = #tpu.dot_dimension_numbers<[1], [0], [0], [1], [0, 0, 1, 1], [], []>} : vector<128x40xf32>, vector<40x128xf32>, vector<128x128xf32> -> vector<128x128xf32>
    %c0_4 = arith.constant 0 : index
    %c0_5 = arith.constant 0 : index
    %6 = vector.load %arg3[%c0_4, %c0_5] : memref<128x128xf32, #tpu.memory_space<vmem>>, vector<128x128xf32>
    tpu.vector_store %arg3[%c0_4, %c0_5], %5 {strides = array<i32>} : memref<128x128xf32, #tpu.memory_space<vmem>>, vector<128x128xf32>,
    %cst_6 = arith.constant dense<0.000000e+00> : vector<128xf32>
    %7 = vector.multi_reduction <add>, %5, %cst_6 [0] : vector<128x128xf32> to vector<128xf32>
    %8 = vector.shape_cast %7 : vector<128xf32> to vector<1x128xf32>
    %9 = arith.mulf %5, %5 : vector<128x128xf32>
    %cst_7 = arith.constant dense<0.000000e+00> : vector<128xf32>
    %10 = vector.multi_reduction <add>, %9, %cst_7 [0] : vector<128x128xf32> to vector<128xf32>
    %11 = vector.shape_cast %10 : vector<128xf32> to vector<1x128xf32>
    %c0_8 = arith.constant 0 : index
    %c0_9 = arith.constant 0 : index
    %12 = vector.load %arg4[%c0_8, %c0_9] : memref<2x128xf32, #tpu.memory_space<vmem>>, vector<2x128xf32>
    %13 = tpu.concatenate %8, %11 in 0 : vector<1x128xf32>, vector<1x128xf32> -> vector<2x128xf32>
    %14 = arith.addf %12, %13 : vector<2x128xf32>
    %c0_10 = arith.constant 0 : index
    %c0_11 = arith.constant 0 : index
    %15 = vector.load %arg4[%c0_10, %c0_11] : memref<2x128xf32, #tpu.memory_space<vmem>>, vector<2x128xf32>
    tpu.vector_store %arg4[%c0_10, %c0_11], %14 {strides = array<i32>} : memref<2x128xf32, #tpu.memory_space<vmem>>, vector<2x128xf32>,
    return
  }
  func.func @transform_0(%arg0: i32) -> (i32, i32) {
    %c0_i32 = arith.constant 0 : i32
    %c0_i32_0 = arith.constant 0 : i32
    return %arg0, %c0_i32 : i32, i32
  }
  func.func @transform_1(%arg0: i32) -> (i32, i32) {
    %c0_i32 = arith.constant 0 : i32
    %c0_i32_0 = arith.constant 0 : i32
    %c0_i32_1 = arith.constant 0 : i32
    return %c0_i32, %c0_i32_0 : i32, i32
  }
  func.func @transform_2(%arg0: i32) -> (i32, i32) {
    %c0_i32 = arith.constant 0 : i32
    %c0_i32_0 = arith.constant 0 : i32
    return %arg0, %c0_i32 : i32, i32
  }
  func.func @transform_3(%arg0: i32) -> (i32, i32) {
    %c0_i32 = arith.constant 0 : i32
    %c0_i32_0 = arith.constant 0 : i32
    %c0_i32_1 = arith.constant 0 : i32
    return %c0_i32, %c0_i32_0 : i32, i32
  }
}

</mosaic_0001>

<llo_original>
// kernel: tpu_custom_call.1
$region0: #{tpu_custom_call.1}
  #allocation0 [shape = 'u32[]', space=smem, size = 0x4, offset = 0x4, fixed_abs, tag = 'smem constant byte address 0x4 - core index']
  #allocation1 [shape = 'u32[72,128]{1,0:T(1,128)}', space=vmem, size = 0x9000, scoped, tag = 'internal scratch']
  %s0 = inlined_call_operand.vmem [shape: f32[128,40], index: 0, kind: input, shape index: {}]
  %s1 = inlined_call_operand.vmem [shape: f32[40,128], index: 1, kind: input, shape index: {}]
  %s2 = inlined_call_operand.hbm [shape: f32[128,128], index: 2, kind: output, shape index: {0}]
  %s3 = inlined_call_operand.hbm [shape: f32[2,128], index: 3, kind: output, shape index: {1}]
  %4 = xla_tuple %s2, %s3
  %s5 = sld [smem:[#allocation0]]
  $region30: #{tpu_custom_call.1} parent=0
    _
  %s7 = ssub.s32 1, %s5
  %s8 = scalar_select 0, %s7, %s5
  $region1: #{tpu_custom_call.1} parent=0
    #allocation2 [shape = 'u8[65536]{0}', space=vmem, size = 0x10000, scoped, tag = 'output window, operand 0, single buffered']
    #allocation3 [shape = 's32[1]{0}', space=sflag, size = 0x4, scoped, tag = 'scoped memory for tpu_custom_call.1']
    #allocation4 [shape = 'u8[1024]{0}', space=vmem, size = 0x400, scoped, tag = 'output window, operand 1, single buffered']
    #allocation5 [shape = 's32[1]{0}', space=sflag, size = 0x4, scoped, tag = 'scoped memory for tpu_custom_call.1']
    %9 = vsyncpa [#allocation3], 0
    %10 = vsyncpa [#allocation5], 0
    // Predicated region
    $region2: #{tpu_custom_call.1} parent=1 // pred_check
      _
    $region3: #{tpu_custom_call.1} parent=1 // pred_check_branch
      %12 = sbr.rel (0) target = $region5
    $region4: #{tpu_custom_call.1} parent=1 // pred_region
      _
    $region5: #{tpu_custom_call.1} parent=1 // pred_fallthru
      _
    // Predicated region
    $region6: #{tpu_custom_call.1} parent=1 // pred_check
      _
    $region7: #{tpu_custom_call.1} parent=1 // pred_check_branch
      %14 = sbr.rel (0) target = $region9
    $region8: #{tpu_custom_call.1} parent=1 // pred_region
      _
    $region9: #{tpu_custom_call.1} parent=1 // pred_fallthru
      _
    %p15 = scmp.eq.s32.totalorder 0, 0
    // Predicated region
    $region10: #{tpu_custom_call.1} parent=1 // pred_check
      %p16 = pneg %p15
    $region11: #{tpu_custom_call.1} parent=1 // pred_check_branch
      %18 = sbr.rel (%p16) target = $region13
    $region12: #{tpu_custom_call.1} parent=1 // pred_region
      %19 = vst [vmem:[#allocation4] sm:$0x3] 0.0
    $region13: #{tpu_custom_call.1} parent=1 // pred_fallthru
      _
    %v20 = vld [vmem:[%s0] sm:$0xff]
    %v21 = vld [vmem:[%s0 + $0x8] sm:$0xff]
    %v22 = vld [vmem:[%s0 + $0x10] sm:$0xff]
    %v23 = vld [vmem:[%s0 + $0x18] sm:$0xff]
    %v24 = vld [vmem:[%s0 + $0x20] sm:$0xff]
    %v25 = vld [vmem:[%s0 + $0x28] sm:$0xff]
    %v26 = vld [vmem:[%s0 + $0x30] sm:$0xff]
    %v27 = vld [vmem:[%s0 + $0x38] sm:$0xff]
    %v28 = vld [vmem:[%s0 + $0x40] sm:$0xff]
    %v29 = vld [vmem:[%s0 + $0x48] sm:$0xff]
    %v30 = vld [vmem:[%s0 + $0x50] sm:$0xff]
    %v31 = vld [vmem:[%s0 + $0x58] sm:$0xff]
    %v32 = vld [vmem:[%s0 + $0x60] sm:$0xff]
    %v33 = vld [vmem:[%s0 + $0x68] sm:$0xff]
    %v34 = vld [vmem:[%s0 + $0x70] sm:$0xff]
    %v35 = vld [vmem:[%s0 + $0x78] sm:$0xff]
    %v36 = vld [vmem:[%s1] sm:$0xff]
    %v37 = vld [vmem:[%s1 + $0x8] sm:$0xff]
    %v38 = vld [vmem:[%s1 + $0x10] sm:$0xff]
    %v39 = vld [vmem:[%s1 + $0x18] sm:$0xff]
    %v40 = vld [vmem:[%s1 + $0x20] sm:$0xff]
    %vm41 = vcmask 326656
    %v43 = vsel %vm41, %v20, 0
    %v46 = vsel %vm41, %v21, 0
    %v49 = vsel %vm41, %v22, 0
    %v52 = vsel %vm41, %v23, 0
    %v55 = vsel %vm41, %v24, 0
    %v58 = vsel %vm41, %v25, 0
    %v61 = vsel %vm41, %v26, 0
    %v64 = vsel %vm41, %v27, 0
    %v67 = vsel %vm41, %v28, 0
    %v70 = vsel %vm41, %v29, 0
    %v73 = vsel %vm41, %v30, 0
    %v76 = vsel %vm41, %v31, 0
    %v79 = vsel %vm41, %v32, 0
    %v82 = vsel %vm41, %v33, 0
    %v85 = vsel %vm41, %v34, 0
    %v88 = vsel %vm41, %v35, 0
    %90 = vmatpush.msra.mxu0 0.0
    %91 = vmatpush.msra.mxu0 0.0
    %92 = vmatpush.msra.mxu0 0.0
    %93 = vmatpush.msra.mxu0 0.0
    %94 = vmatpush.msra.mxu0 0.0
    %95 = vmatpush.msra.mxu0 0.0
    %96 = vmatpush.msra.mxu0 0.0
    %97 = vmatpush.msra.mxu0 0.0
    %98 = vmatpush.msra.mxu0 0.0
    %99 = vmatpush.msra.mxu0 0.0
    %100 = vmatpush.msra.mxu0 0.0
    %101 = vmatpush.msra.mxu0 %v40
    %102 = vmatpush.msra.mxu0 %v39
    %103 = vmatpush.msra.mxu0 %v38
    %104 = vmatpush.msra.mxu0 %v37
    %105 = vmatpush.msra.mxu0 %v36
    %106 = vmatmul.f32.gmra.mxu0 %v43
    %v107 = vpop.f32.mrf.mxu0
    %v108 = vadd.f32 0.0, %v107
    %109 = vmatmul.f32.gmra.mxu0 %v46
    %v110 = vpop.f32.mrf.mxu0
    %v111 = vadd.f32 0.0, %v110
    %112 = vmatmul.f32.gmra.mxu0 %v49
    %v113 = vpop.f32.mrf.mxu0
    %v114 = vadd.f32 0.0, %v113
    %115 = vmatmul.f32.gmra.mxu0 %v52
    %v116 = vpop.f32.mrf.mxu0
    %v117 = vadd.f32 0.0, %v116
    %118 = vmatmul.f32.gmra.mxu0 %v55
    %v119 = vpop.f32.mrf.mxu0
    %v120 = vadd.f32 0.0, %v119
    %121 = vmatmul.f32.gmra.mxu0 %v58
    %v122 = vpop.f32.mrf.mxu0
    %v123 = vadd.f32 0.0, %v122
    %124 = vmatmul.f32.gmra.mxu0 %v61
    %v125 = vpop.f32.mrf.mxu0
    %v126 = vadd.f32 0.0, %v125
    %127 = vmatmul.f32.gmra.mxu0 %v64
    %v128 = vpop.f32.mrf.mxu0
    %v129 = vadd.f32 0.0, %v128
    %130 = vmatmul.f32.gmra.mxu0 %v67
    %v131 = vpop.f32.mrf.mxu0
    %v132 = vadd.f32 0.0, %v131
    %133 = vmatmul.f32.gmra.mxu0 %v70
    %v134 = vpop.f32.mrf.mxu0
    %v135 = vadd.f32 0.0, %v134
    %136 = vmatmul.f32.gmra.mxu0 %v73
    %v137 = vpop.f32.mrf.mxu0
    %v138 = vadd.f32 0.0, %v137
    %139 = vmatmul.f32.gmra.mxu0 %v76
    %v140 = vpop.f32.mrf.mxu0
    %v141 = vadd.f32 0.0, %v140
    %142 = vmatmul.f32.gmra.mxu0 %v79
    %v143 = vpop.f32.mrf.mxu0
    %v144 = vadd.f32 0.0, %v143
    %145 = vmatmul.f32.gmra.mxu0 %v82
    %v146 = vpop.f32.mrf.mxu0
    %v147 = vadd.f32 0.0, %v146
    %148 = vmatmul.f32.gmra.mxu0 %v85
    %v149 = vpop.f32.mrf.mxu0
    %v150 = vadd.f32 0.0, %v149
    %151 = vmatmul.f32.gmra.mxu0 %v88
    %v152 = vpop.f32.mrf.mxu0
    %v153 = vadd.f32 0.0, %v152
    %154 = vdwg.mxu0
    %155 = vst [vmem:[#allocation2] sm:$0xff] %v108
    %156 = vst [vmem:[#allocation2 + $0x8] sm:$0xff] %v111
    %157 = vst [vmem:[#allocation2 + $0x10] sm:$0xff] %v114
    %158 = vst [vmem:[#allocation2 + $0x18] sm:$0xff] %v117
    %159 = vst [vmem:[#allocation2 + $0x20] sm:$0xff] %v120
    %160 = vst [vmem:[#allocation2 + $0x28] sm:$0xff] %v123
    %161 = vst [vmem:[#allocation2 + $0x30] sm:$0xff] %v126
    %162 = vst [vmem:[#allocation2 + $0x38] sm:$0xff] %v129
    %163 = vst [vmem:[#allocation2 + $0x40] sm:$0xff] %v132
    %164 = vst [vmem:[#allocation2 + $0x48] sm:$0xff] %v135
    %165 = vst [vmem:[#allocation2 + $0x50] sm:$0xff] %v138
    %166 = vst [vmem:[#allocation2 + $0x58] sm:$0xff] %v141
    %167 = vst [vmem:[#allocation2 + $0x60] sm:$0xff] %v144
    %168 = vst [vmem:[#allocation2 + $0x68] sm:$0xff] %v147
    %169 = vst [vmem:[#allocation2 + $0x70] sm:$0xff] %v150
    %170 = vst [vmem:[#allocation2 + $0x78] sm:$0xff] %v153
    %v171 = vadd.f32 %v108, %v111
    %v172 = vadd.f32 %v171, %v114
    %v173 = vadd.f32 %v172, %v117
    %v174 = vadd.f32 %v173, %v120
    %v175 = vadd.f32 %v174, %v123
    %v176 = vadd.f32 %v175, %v126
    %v177 = vadd.f32 %v176, %v129
    %v178 = vadd.f32 %v177, %v132
    %v179 = vadd.f32 %v178, %v135
    %v180 = vadd.f32 %v179, %v138
    %v181 = vadd.f32 %v180, %v141
    %v182 = vadd.f32 %v181, %v144
    %v183 = vadd.f32 %v182, %v147
    %v184 = vadd.f32 %v183, %v150
    %v185 = vadd.f32 %v184, %v153
    %v186 = vrot.slane %v185, 4
    %v187 = vadd.f32 %v185, %v186
    %v188 = vrot.slane %v187, 2
    %v189 = vadd.f32 %v187, %v188
    %v190 = vrot.slane %v189, 1
    %v191 = vadd.f32 %v189, %v190
    %v192 = vmul.f32 %v108, %v108
    %v193 = vmul.f32 %v111, %v111
    %v194 = vmul.f32 %v114, %v114
    %v195 = vmul.f32 %v117, %v117
    %v196 = vmul.f32 %v120, %v120
    %v197 = vmul.f32 %v123, %v123
    %v198 = vmul.f32 %v126, %v126
    %v199 = vmul.f32 %v129, %v129
    %v200 = vmul.f32 %v132, %v132
    %v201 = vmul.f32 %v135, %v135
    %v202 = vmul.f32 %v138, %v138
    %v203 = vmul.f32 %v141, %v141
    %v204 = vmul.f32 %v144, %v144
    %v205 = vmul.f32 %v147, %v147
    %v206 = vmul.f32 %v150, %v150
    %v207 = vmul.f32 %v153, %v153
    %v208 = vadd.f32 %v192, %v193
    %v209 = vadd.f32 %v208, %v194
    %v210 = vadd.f32 %v209, %v195
    %v211 = vadd.f32 %v210, %v196
    %v212 = vadd.f32 %v211, %v197
    %v213 = vadd.f32 %v212, %v198
    %v214 = vadd.f32 %v213, %v199
    %v215 = vadd.f32 %v214, %v200
    %v216 = vadd.f32 %v215, %v201
    %v217 = vadd.f32 %v216, %v202
    %v218 = vadd.f32 %v217, %v203
    %v219 = vadd.f32 %v218, %v204
    %v220 = vadd.f32 %v219, %v205
    %v221 = vadd.f32 %v220, %v206
    %v222 = vadd.f32 %v221, %v207
    %v223 = vrot.slane %v222, 4
    %v224 = vadd.f32 %v222, %v223
    %v225 = vrot.slane %v224, 2
    %v226 = vadd.f32 %v224, %v225
    %v227 = vrot.slane %v226, 1
    %v228 = vadd.f32 %v226, %v227
    %v229 = vld [vmem:[#allocation4] sm:$0x3]
    %vm230 = vcmask 1040384
    %v231 = vsel %vm230, %v191, %v228
    %v232 = vadd.f32 %v229, %v231
    %233 = vst [vmem:[#allocation4] sm:$0x3] %v232
    // Predicated region
    $region14: #{tpu_custom_call.1} parent=1 // pred_check
      _
    $region15: #{tpu_custom_call.1} parent=1 // pred_check_branch
      %235 = sbr.rel (0) target = $region17
    $region16: #{tpu_custom_call.1} parent=1 // pred_region
      %237 = vsyncadd [#allocation3], 0
      %s238 = sshll.u32 [#allocation2], 4
      %s239 = int_to_ptr.vmem [resolvable:$true] %s238
      %s240 = sshll.u32 %s2, 4
      %s241 = int_to_ptr.hbm [resolvable:$true] %s240
      %246 = dma.vmem_to_hbm [thread:$0]  %s239, 2048, %s241, [#allocation3], 128, 128, 8
    $region17: #{tpu_custom_call.1} parent=1 // pred_fallthru
      _
    // Predicated region
    $region18: #{tpu_custom_call.1} parent=1 // pred_check
      _
    $region19: #{tpu_custom_call.1} parent=1 // pred_check_branch
      %248 = sbr.rel (0) target = $region21
    $region20: #{tpu_custom_call.1} parent=1 // pred_region
      %250 = vsyncadd [#allocation5], 0
      %s252 = sshll.u32 [#allocation4], 4
      %s253 = int_to_ptr.vmem [resolvable:$true] %s252
      %s254 = sshll.u32 %s3, 4
      %s255 = int_to_ptr.hbm [resolvable:$true] %s254
      %257 = dma.vmem_to_hbm [thread:$0]  %s253, 32, %s255, [#allocation5]
    $region21: #{tpu_custom_call.1} parent=1 // pred_fallthru
      _
    // Predicated region
    $region22: #{tpu_custom_call.1} parent=1 // pred_check
      _
    $region23: #{tpu_custom_call.1} parent=1 // pred_check_branch
      %259 = sbr.rel (0) target = $region25
    $region24: #{tpu_custom_call.1} parent=1 // pred_region
      %261 = dma.done [#allocation3], 2048
    $region25: #{tpu_custom_call.1} parent=1 // pred_fallthru
      _
    // Predicated region
    $region26: #{tpu_custom_call.1} parent=1 // pred_check
      _
    $region27: #{tpu_custom_call.1} parent=1 // pred_check_branch
      %263 = sbr.rel (0) target = $region29
    $region28: #{tpu_custom_call.1} parent=1 // pred_region
      %265 = dma.done [#allocation5], 32
    $region29: #{tpu_custom_call.1} parent=1 // pred_fallthru
      _
    %266 = vsyncpa [#allocation3], 1
    %267 = vsyncpa [#allocation5], 1

</llo_original>
